<compile_context>
chip_gen: v6e
topology: v6e:2x2x1
jax: 0.10.0
libtpu: 0.0.40
codegen_flags: <defaults>
</compile_context>

<pallas_src>
import functools

import jax
import jax.numpy as jnp
from jax.experimental import pallas as pl
from jax.experimental.pallas import tpu as pltpu


def _vecnorm_direct_kernel(x_ref, o_ref):
    # x_ref / o_ref: (TN, D, W) tile; reduce over axis 1 (sublane axis).
    x = x_ref[...]
    xf = x.astype(jnp.float32)                      # no-op for f32 inputs
    ssq = jnp.sum(xf * xf, axis=1, keepdims=True)   # (TN, 1, W)
    inv = jax.lax.rsqrt(ssq)                        # EUP, no full-tile divide
    o_ref[...] = (xf * inv).astype(o_ref.dtype)


def _vecnorm_flat_kernel(x_ref, o_ref, *, d, w, use_tree):
    # x_ref / o_ref: (TN, D*W) lane-dense tile.  Element (n, i*W + j) belongs
    # to vector (n, :, j).  Cyclic lane-rolls by multiples of W stay inside the
    # residue class mod W, so summing rolled copies both reduces over D and
    # broadcasts the sum back to every lane in one shot (XLU work only).
    x = x_ref[...]
    xf = x.astype(jnp.float32)                      # no-op for f32 inputs
    sq = xf * xf
    s = sq
    if use_tree:                                    # D power of two: log2(D) rolls
        k = 1
        while k < d:
            s = s + pltpu.roll(s, shift=k * w, axis=1)
            k *= 2
    else:                                           # general D: D-1 rolls
        cur = sq
        for _ in range(d - 1):
            cur = pltpu.roll(cur, shift=w, axis=1)
            s = s + cur
    inv = jax.lax.rsqrt(s)
    o_ref[...] = (xf * inv).astype(o_ref.dtype)


def _choose_rows(n_rows, row_bytes, target_bytes):
    """Rows per block: ~target_bytes of data; multiple of 8 when blocking."""
    tn = int(max(1, target_bytes // max(row_bytes, 1)))
    if tn >= n_rows:
        return n_rows
    if tn >= 8:
        tn = (tn // 8) * 8
    return tn


_COMPILER_PARAMS = pltpu.CompilerParams(
    dimension_semantics=("parallel",),
    vmem_limit_bytes=32 * 1024 * 1024,  # safe on v5e/v6e/v7x; blocks stay ~1 MiB
)


def vector_normalization(x, *, block_target_bytes=1 << 20):
    """x: [B, C, D, W] -> x / ||x||_2 along axis 2 (keepdim broadcast)."""
    B, C, D, W = x.shape
    N = B * C
    itemsize = jnp.dtype(x.dtype).itemsize
    row_bytes = D * W * itemsize

    # Lane-dense flat layout only pays off when W itself is lane-sparse and
    # the flattened row is a clean lane multiple.
    use_flat = (W % 128 != 0) and ((D * W) % 128 == 0)
    # TODO(synk): when W < 128 and D*W is not a multiple of 128, we fall back
    # to the direct (lane-sparse) layout instead of padding W.

    tn = _choose_rows(N, row_bytes, block_target_bytes)
    grid = (pl.cdiv(N, tn),)

    if use_flat:
        dw = D * W
        xv = x.reshape(N, dw)  # free view of the contiguous buffer
        kernel = functools.partial(
            _vecnorm_flat_kernel, d=D, w=W, use_tree=(D & (D - 1)) == 0
        )
        out = pl.pallas_call(
            kernel,
            out_shape=jax.ShapeDtypeStruct((N, dw), x.dtype),
            grid_spec=pltpu.PrefetchScalarGridSpec(
                num_scalar_prefetch=0,
                grid=grid,
                in_specs=[pl.BlockSpec((tn, dw), lambda i: (i, 0))],
                out_specs=pl.BlockSpec((tn, dw), lambda i: (i, 0)),
            ),
            compiler_params=_COMPILER_PARAMS,
        )(xv)
    else:
        xv = x.reshape(N, D, W)  # free view
        out = pl.pallas_call(
            _vecnorm_direct_kernel,
            out_shape=jax.ShapeDtypeStruct((N, D, W), x.dtype),
            grid_spec=pltpu.PrefetchScalarGridSpec(
                num_scalar_prefetch=0,
                grid=grid,
                in_specs=[pl.BlockSpec((tn, D, W), lambda i: (i, 0, 0))],
                out_specs=pl.BlockSpec((tn, D, W), lambda i: (i, 0, 0)),
            ),
            compiler_params=_COMPILER_PARAMS,
        )(xv)

    return out.reshape(B, C, D, W)


def _reference(x):
    return x / jnp.sqrt(jnp.sum(x * x, axis=2, keepdims=True))


if __name__ == "__main__":
    key = jax.random.PRNGKey(0)
    k1, k2, k3 = jax.random.split(key, 3)

    # 1) Module-consistent small shape -> flat lane-dense path (W=16, D*W=256).
    x1 = jax.random.normal(k1, (2, 4, 16, 16), dtype=jnp.float32)
    o1 = jax.block_until_ready(vector_normalization(x1))
    assert o1.shape == x1.shape
    assert jnp.allclose(o1, _reference(x1), atol=1e-5, rtol=1e-5)

    # 2) Lane-dense trailing dim -> direct path (W multiple of 128).
    x2 = jax.random.normal(k2, (2, 2, 3, 128), dtype=jnp.float32)
    o2 = jax.block_until_ready(vector_normalization(x2))
    assert jnp.allclose(o2, _reference(x2), atol=1e-5, rtol=1e-5)

    # 3) Fallback path (W < 128 and D*W not a lane multiple).
    x3 = jax.random.normal(k3, (2, 2, 5, 24), dtype=jnp.float32)
    o3 = jax.block_until_ready(vector_normalization(x3))
    assert jnp.allclose(o3, _reference(x3), atol=1e-5, rtol=1e-5)

    print("KERNEL_OK")
</pallas_src>

<mosaic_0001>
module attributes {stable_mosaic.version = 11 : i64} {
  func.func @_vecnorm_flat_kernel(%arg0: i32, %arg1: memref<8x256xf32, #tpu.memory_space<vmem>>, %arg2: memref<8x256xf32, #tpu.memory_space<vmem>>) attributes {dimension_semantics = [#tpu.dimension_semantics<parallel>], iteration_bounds = array<i64: 1>, scalar_prefetch = 0 : i64, scratch_operands = 0 : i64, tpu.core_type = #tpu.core_type<tc>, window_params = [{transform_indices = @transform_0, window_bounds = array<i64: 8, 256>}, {transform_indices = @transform_1, window_bounds = array<i64: 8, 256>}]} {
    %c0 = arith.constant 0 : index
    %c0_0 = arith.constant 0 : index
    %0 = vector.load %arg1[%c0, %c0_0] : memref<8x256xf32, #tpu.memory_space<vmem>>, vector<8x256xf32>
    %1 = arith.mulf %0, %0 : vector<8x256xf32>
    %c16_i32 = arith.constant 16 : i32
    %2 = tpu.dynamic_rotate %1 by %c16_i32 dim 1 : vector<8x256xf32>, i32 -> vector<8x256xf32>
    %3 = arith.addf %1, %2 : vector<8x256xf32>
    %c32_i32 = arith.constant 32 : i32
    %4 = tpu.dynamic_rotate %3 by %c32_i32 dim 1 : vector<8x256xf32>, i32 -> vector<8x256xf32>
    %5 = arith.addf %3, %4 : vector<8x256xf32>
    %c64_i32 = arith.constant 64 : i32
    %6 = tpu.dynamic_rotate %5 by %c64_i32 dim 1 : vector<8x256xf32>, i32 -> vector<8x256xf32>
    %7 = arith.addf %5, %6 : vector<8x256xf32>
    %c128_i32 = arith.constant 128 : i32
    %8 = tpu.dynamic_rotate %7 by %c128_i32 dim 1 : vector<8x256xf32>, i32 -> vector<8x256xf32>
    %9 = arith.addf %7, %8 : vector<8x256xf32>
    %10 = math.rsqrt %9 : vector<8x256xf32>
    %11 = arith.mulf %0, %10 : vector<8x256xf32>
    %c0_1 = arith.constant 0 : index
    %c0_2 = arith.constant 0 : index
    %12 = vector.load %arg2[%c0_1, %c0_2] : memref<8x256xf32, #tpu.memory_space<vmem>>, vector<8x256xf32>
    tpu.vector_store %arg2[%c0_1, %c0_2], %11 {strides = array<i32>} : memref<8x256xf32, #tpu.memory_space<vmem>>, vector<8x256xf32>,
    return
  }
  func.func @transform_0(%arg0: i32) -> (i32, i32) {
    %c0_i32 = arith.constant 0 : i32
    %c0_i32_0 = arith.constant 0 : i32
    return %arg0, %c0_i32 : i32, i32
  }
  func.func @transform_1(%arg0: i32) -> (i32, i32) {
    %c0_i32 = arith.constant 0 : i32
    %c0_i32_0 = arith.constant 0 : i32
    return %arg0, %c0_i32 : i32, i32
  }
}

</mosaic_0001>

<llo_original>
// kernel: tpu_custom_call.1
$region0: #{tpu_custom_call.1}
  #allocation0 [shape = 'u32[]', space=smem, size = 0x4, offset = 0x4, fixed_abs, tag = 'smem constant byte address 0x4 - core index']
  #allocation1 [shape = 'u32[144,128]{1,0:T(1,128)}', space=vmem, size = 0x12000, scoped, tag = 'internal scratch']
  %s0 = inlined_call_operand.hbm [shape: f32[8,256], index: 0, kind: input, shape index: {}]
  %s1 = inlined_call_operand.hbm [shape: f32[8,256], index: 1, kind: output, shape index: {}]
  %s2 = sld [smem:[#allocation0]]
  $region18: #{tpu_custom_call.1} parent=0
    _
  %s4 = ssub.s32 1, %s2
  %s5 = scalar_select 0, %s4, %s2
  $region1: #{tpu_custom_call.1} parent=0
    #allocation2 [shape = 'u8[8192]{0}', space=vmem, size = 0x2000, scoped, tag = 'input window, operand 0, single buffered']
    #allocation3 [shape = 's32[1]{0}', space=sflag, size = 0x4, scoped, tag = 'scoped memory for tpu_custom_call.1']
    #allocation4 [shape = 's32[1]{0}', space=sflag, size = 0x4, scoped, tag = 'scoped memory for tpu_custom_call.1']
    #allocation5 [shape = 'u8[8192]{0}', space=vmem, size = 0x2000, scoped, tag = 'output window, operand 0, single buffered']
    %6 = vsyncpa [#allocation3], 0
    %7 = vsyncpa [#allocation4], 0
    // Predicated region
    $region2: #{tpu_custom_call.1} parent=1 // pred_check
      _
    $region3: #{tpu_custom_call.1} parent=1 // pred_check_branch
      %9 = sbr.rel (0) target = $region5
    $region4: #{tpu_custom_call.1} parent=1 // pred_region
      %s11 = ssub.s32 256, 256
      %12 = vsyncadd [#allocation3], %s11
      %s14 = sshll.u32 [#allocation2], 4
      %s15 = int_to_ptr.vmem [resolvable:$true] %s14
      %17 = dma.hbm_to_vmem [thread:$0]  %s0, 256, %s15, [#allocation3]
    $region5: #{tpu_custom_call.1} parent=1 // pred_fallthru
      _
    // Predicated region
    $region6: #{tpu_custom_call.1} parent=1 // pred_check
      _
    $region7: #{tpu_custom_call.1} parent=1 // pred_check_branch
      %19 = sbr.rel (0) target = $region9
    $region8: #{tpu_custom_call.1} parent=1 // pred_region
      %20 = dma.done [#allocation3], 256
    $region9: #{tpu_custom_call.1} parent=1 // pred_fallthru
      _
    %v21 = vld [vmem:[#allocation2] sm:$0xff]
    %v22 = vld [vmem:[#allocation2 + $0x8] sm:$0xff]
    %v23 = vmul.f32 %v21, %v21
    %v24 = vmul.f32 %v22, %v22
    %25 = vrot.lane.b32.xlu0 %v23, 16
    %v26 = vpop.permute.xlu0 %25
    %27 = vrot.lane.b32.xlu0 %v24, 16
    %v28 = vpop.permute.xlu0 %27
    %v29 = vlaneseq
    %v30 = vand.u32 %v29, 127
    %vm31 = vcmp.lt.s32.totalorder %v30, 16
    %v32 = vsel %vm31, %v26, %v28
    %v33 = vsel %vm31, %v28, %v26
    %v34 = vadd.f32 %v23, %v33
    %v35 = vadd.f32 %v24, %v32
    %36 = vrot.lane.b32.xlu0 %v34, 32
    %v37 = vpop.permute.xlu0 %36
    %38 = vrot.lane.b32.xlu0 %v35, 32
    %v39 = vpop.permute.xlu0 %38
    %vm40 = vcmp.lt.s32.totalorder %v30, 32
    %v41 = vsel %vm40, %v37, %v39
    %v42 = vsel %vm40, %v39, %v37
    %v43 = vadd.f32 %v34, %v42
    %v44 = vadd.f32 %v35, %v41
    %45 = vrot.lane.b32.xlu0 %v43, 64
    %v46 = vpop.permute.xlu0 %45
    %47 = vrot.lane.b32.xlu0 %v44, 64
    %v48 = vpop.permute.xlu0 %47
    %vm49 = vcmp.lt.s32.totalorder %v30, 64
    %v50 = vsel %vm49, %v46, %v48
    %v51 = vsel %vm49, %v48, %v46
    %v52 = vadd.f32 %v43, %v51
    %v53 = vadd.f32 %v44, %v50
    %v54 = vadd.f32 %v52, %v53
    %v55 = vrsqrt.pop %v54
    %v56 = vmul.f32 %v21, %v55
    %v57 = vmul.f32 %v22, %v55
    %58 = vst [vmem:[#allocation5] sm:$0xff] %v56
    %59 = vst [vmem:[#allocation5 + $0x8] sm:$0xff] %v57
    // Predicated region
    $region10: #{tpu_custom_call.1} parent=1 // pred_check
      _
    $region11: #{tpu_custom_call.1} parent=1 // pred_check_branch
      %61 = sbr.rel (0) target = $region13
    $region12: #{tpu_custom_call.1} parent=1 // pred_region
      %s63 = ssub.s32 256, 256
      %64 = vsyncadd [#allocation4], %s63
      %s66 = sshll.u32 [#allocation5], 4
      %s67 = int_to_ptr.vmem [resolvable:$true] %s66
      %69 = dma.vmem_to_hbm [thread:$0]  %s67, 256, %s1, [#allocation4]
    $region13: #{tpu_custom_call.1} parent=1 // pred_fallthru
      _
    // Predicated region
    $region14: #{tpu_custom_call.1} parent=1 // pred_check
      _
    $region15: #{tpu_custom_call.1} parent=1 // pred_check_branch
      %71 = sbr.rel (0) target = $region17
    $region16: #{tpu_custom_call.1} parent=1 // pred_region
      %72 = dma.done [#allocation4], 256
    $region17: #{tpu_custom_call.1} parent=1 // pred_fallthru
      _
    %73 = vsyncpa [#allocation3], 1
    %74 = vsyncpa [#allocation4], 1

</llo_original>
